<compile_context>
chip_gen: v6e
topology: v6e:2x2x1
jax: 0.10.0
libtpu: 0.0.40
codegen_flags: <defaults>
</compile_context>

<pallas_src>
import jax
import jax.numpy as jnp
from jax.experimental import pallas as pl
from jax.experimental.pallas import tpu as pltpu


# ----------------------------------------------------------------------------
# Kernel: one matmul + bias, f32 accumulation.
# ----------------------------------------------------------------------------
def _tau_kernel(xp_ref, w_ref, c_ref, out_ref):
    acc = jnp.dot(xp_ref[...], w_ref[...], preferred_element_type=jnp.float32)
    out_ref[...] = (acc + c_ref[...]).astype(out_ref.dtype)


# ----------------------------------------------------------------------------
# Tiling helpers.
# ----------------------------------------------------------------------------
def _round_up(v, m):
    return -(-v // m) * m


def _lane_multiple():
    """256-wide N tiles fill a full MXU pass on v6e/v7x; 128 suffices on v5e-."""
    try:
        kind = jax.devices()[0].device_kind.lower()
    except Exception:  # pragma: no cover
        return 128
    for tag in ("v2", "v3", "v4", "v5"):
        if tag in kind:
            return 128
    return 256


def _pick_tile_b(batch):
    """Batch tile: full batch when tiny; otherwise >=2 grid steps (v7x has two
    TensorCores that only get work via the parallel grid), capped at 512 rows
    (~85% of HBM roofline per measured sweeps, safe for v5e's scoped VMEM)."""
    if batch < 16:
        return batch
    return min(512, _round_up(-(-batch // 2), 8))


def _pick_tile_n(out_lane, k_dim, itemsize, lane, budget_bytes=16 * 1024 * 1024):
    """Keep W whole-resident when it fits a conservative budget (safe on all
    generations incl. v7x's 64 MiB VMEM); otherwise stream column panels."""
    if k_dim * out_lane * itemsize <= budget_bytes:
        return out_lane
    tn = (budget_bytes // (2 * k_dim * itemsize)) // lane * lane  # 2 panel bufs
    return int(max(lane, min(tn, 512)))


# ----------------------------------------------------------------------------
# Host-side affine fold (always in f32).
# ----------------------------------------------------------------------------
def fold_params(params):
    wx, bx = params["wx"], params["bx"]      # (H, in),   (1, H)
    wp, bp = params["wp"], params["bp"]      # (H, L2),   (1, H)
    wo, bo = params["wo"], params["bo"]      # (out, 2H), (1, out)
    hidden = wx.shape[0]
    wo_x = wo[:, :hidden]                    # (out, H)
    wo_p = wo[:, hidden:]                    # (out, H)
    a = wx.T @ wo_x.T                        # (in,  out)
    bm = wp.T @ wo_p.T                       # (L2,  out)
    w = jnp.concatenate([a, bm], axis=0)     # (in+L2, out)
    c = bo + bx @ wo_x.T + bp @ wo_p.T       # (1, out)
    return {"W": w, "c": c}


# ----------------------------------------------------------------------------
# Wrapper.
# ----------------------------------------------------------------------------
def tau_transition_forward(x, pre_tau, folded, *, compute_dtype=jnp.bfloat16,
                           out_dtype=jnp.float32):
    w_f32, c_f32 = folded["W"], folded["c"]
    batch = x.shape[0]
    k_dim, output_dim = w_f32.shape
    assert x.shape[1] + pre_tau.shape[1] == k_dim

    itemsize = jnp.dtype(compute_dtype).itemsize

    # Lane-dense output padding (sliced off after the call).
    lane = _lane_multiple()
    out_lane = _round_up(output_dim, lane)
    tn = _pick_tile_n(out_lane, k_dim, itemsize, lane)
    out_padded = _round_up(out_lane, tn)
    pad_n = out_padded - output_dim

    # Merged operands: one K = in + L2 matmul instead of two tiny-K matmuls.
    xp = jnp.concatenate([x, pre_tau], axis=1).astype(compute_dtype)
    w = jnp.pad(w_f32, ((0, 0), (0, pad_n))).astype(compute_dtype)
    c = jnp.pad(c_f32, ((0, 0), (0, pad_n)))              # bias stays f32

    tile_b = _pick_tile_b(batch)
    grid = (pl.cdiv(batch, tile_b), out_padded // tn)
    resident = grid[1] == 1                                # W/c fully VMEM-resident

    # VMEM budget: streamed xp/out double-buffered, W/c single-buffered when
    # resident; generous headroom, capped at v7x's 64 MiB physical VMEM.
    w_bufs = 1 if resident else 2
    vmem_need = (2 * tile_b * k_dim * itemsize            # xp
                 + w_bufs * k_dim * tn * itemsize         # W
                 + w_bufs * 8 * tn * 4                    # c (sublane-padded)
                 + 2 * tile_b * tn * jnp.dtype(out_dtype).itemsize  # out
                 + tile_b * tn * 4)                       # f32 accumulator
    vmem_limit = int(min(max(2 * vmem_need, 32 * 1024 * 1024), 64 * 1024 * 1024))

    def _spec(shape, imap, mode=None):
        if mode is None:
            return pl.BlockSpec(shape, imap)
        return pl.BlockSpec(shape, imap, pipeline_mode=mode)

    def _call(weight_mode):
        return pl.pallas_call(
            _tau_kernel,
            out_shape=jax.ShapeDtypeStruct((batch, out_padded), out_dtype),
            grid=grid,
            in_specs=[
                _spec((tile_b, k_dim), lambda i, j: (i, 0)),            # xp streams
                _spec((k_dim, tn), lambda i, j: (0, j), weight_mode),   # W
                _spec((1, tn), lambda i, j: (0, j), weight_mode),       # c
            ],
            out_specs=pl.BlockSpec((tile_b, tn), lambda i, j: (i, j)),
            compiler_params=pltpu.CompilerParams(
                dimension_semantics=("parallel", "parallel"),
                vmem_limit_bytes=vmem_limit),
        )(xp, w, c)

    if resident:
        try:
            out_full = _call(pl.Buffered(buffer_count=1))   # no double-buffer for W/c
        except Exception:  # pragma: no cover - fallback if single-buffering rejected
            out_full = _call(None)
    else:
        out_full = _call(None)

    return out_full[:, :output_dim]


# ----------------------------------------------------------------------------
# Reference (un-folded, mirrors the PyTorch module) and synthetic init.
# ----------------------------------------------------------------------------
def init_params(key, input_dim, latent_dim, output_dim, hidden_dim=16):
    ks = jax.random.split(key, 6)

    def linear(kw, kb, out_f, in_f):
        bound = 1.0 / jnp.sqrt(in_f)
        w = jax.random.uniform(kw, (out_f, in_f), jnp.float32, -bound, bound)
        b = jax.random.uniform(kb, (1, out_f), jnp.float32, -bound, bound)
        return w, b

    wx, bx = linear(ks[0], ks[1], hidden_dim, input_dim)
    wp, bp = linear(ks[2], ks[3], hidden_dim, latent_dim ** 2)
    wo, bo = linear(ks[4], ks[5], output_dim, 2 * hidden_dim)
    return {"wx": wx, "bx": bx, "wp": wp, "bp": bp, "wo": wo, "bo": bo}


def reference_forward(x, pre_tau, params):
    h_x = x @ params["wx"].T + params["bx"]
    h_p = pre_tau @ params["wp"].T + params["bp"]
    cat = jnp.concatenate([h_x, h_p], axis=1)
    return cat @ params["wo"].T + params["bo"]


if __name__ == "__main__":
    # batch=2, input_dim=4, latent_dim=4 (latent_dim**2=16), hidden=16, out=8
    B, input_dim, latent_dim, hidden_dim, output_dim = 2, 4, 4, 16, 8

    key = jax.random.PRNGKey(0)
    kx, kp, kparams = jax.random.split(key, 3)
    x = jax.random.normal(kx, (B, input_dim), jnp.float32)
    pre_tau = jax.random.normal(kp, (B, latent_dim ** 2), jnp.float32)

    params = init_params(kparams, input_dim, latent_dim, output_dim, hidden_dim)
    folded = fold_params(params)
    ref = reference_forward(x, pre_tau, params)

    # f32 streaming path: tight check against the PyTorch-semantics reference.
    out_f32 = jax.block_until_ready(
        tau_transition_forward(x, pre_tau, folded, compute_dtype=jnp.float32))
    assert out_f32.shape == (B, output_dim)
    assert jnp.allclose(out_f32, ref, atol=1e-4, rtol=1e-4), "f32 mismatch"

    # Default fast path: bf16 operands, f32 accumulation (looser tolerance).
    out_bf16 = jax.block_until_ready(tau_transition_forward(x, pre_tau, folded))
    assert out_bf16.shape == (B, output_dim)
    assert jnp.allclose(out_bf16, ref, atol=2e-2, rtol=2e-2), "bf16 mismatch"

    print("KERNEL_OK")
</pallas_src>

<mosaic_0001>
module attributes {stable_mosaic.version = 11 : i64} {
  func.func @_tau_kernel(%arg0: i32, %arg1: i32, %arg2: memref<2x20xf32, #tpu.memory_space<vmem>>, %arg3: memref<20x256xf32, #tpu.memory_space<vmem>>, %arg4: memref<1x256xf32, #tpu.memory_space<vmem>>, %arg5: memref<2x256xf32, #tpu.memory_space<vmem>>) attributes {dimension_semantics = [#tpu.dimension_semantics<parallel>, #tpu.dimension_semantics<parallel>], iteration_bounds = array<i64: 1, 1>, scalar_prefetch = 0 : i64, scratch_operands = 0 : i64, tpu.core_type = #tpu.core_type<tc>, window_params = [{transform_indices = @transform_0, window_bounds = array<i64: 2, 20>}, {pipeline_mode = #tpu.pipeline_mode<synchronous>, transform_indices = @transform_1, window_bounds = array<i64: 20, 256>}, {pipeline_mode = #tpu.pipeline_mode<synchronous>, transform_indices = @transform_2, window_bounds = array<i64: 1, 256>}, {transform_indices = @transform_3, window_bounds = array<i64: 2, 256>}]} {
    %c0 = arith.constant 0 : index
    %c0_0 = arith.constant 0 : index
    %0 = vector.load %arg2[%c0, %c0_0] : memref<2x20xf32, #tpu.memory_space<vmem>>, vector<2x20xf32>
    %c0_1 = arith.constant 0 : index
    %c0_2 = arith.constant 0 : index
    %1 = vector.load %arg3[%c0_1, %c0_2] : memref<20x256xf32, #tpu.memory_space<vmem>>, vector<20x256xf32>
    %cst = arith.constant dense<0.000000e+00> : vector<2x256xf32>
    %2 = tpu.matmul %0, %1, %cst {dimension_numbers = #tpu.dot_dimension_numbers<[1], [0], [0], [1], [0, 0, 1, 1], [], []>} : vector<2x20xf32>, vector<20x256xf32>, vector<2x256xf32> -> vector<2x256xf32>
    %c0_3 = arith.constant 0 : index
    %c0_4 = arith.constant 0 : index
    %3 = vector.load %arg4[%c0_3, %c0_4] : memref<1x256xf32, #tpu.memory_space<vmem>>, vector<1x256xf32>
    %4 = vector.broadcast %3 : vector<1x256xf32> to vector<2x256xf32>
    %5 = arith.addf %2, %4 : vector<2x256xf32>
    %c0_5 = arith.constant 0 : index
    %c0_6 = arith.constant 0 : index
    %6 = vector.load %arg5[%c0_5, %c0_6] : memref<2x256xf32, #tpu.memory_space<vmem>>, vector<2x256xf32>
    tpu.vector_store %arg5[%c0_5, %c0_6], %5 {strides = array<i32>} : memref<2x256xf32, #tpu.memory_space<vmem>>, vector<2x256xf32>,
    return
  }
  func.func @transform_0(%arg0: i32, %arg1: i32) -> (i32, i32) {
    %c0_i32 = arith.constant 0 : i32
    %c0_i32_0 = arith.constant 0 : i32
    return %arg0, %c0_i32 : i32, i32
  }
  func.func @transform_1(%arg0: i32, %arg1: i32) -> (i32, i32) {
    %c0_i32 = arith.constant 0 : i32
    %c0_i32_0 = arith.constant 0 : i32
    return %c0_i32, %arg1 : i32, i32
  }
  func.func @transform_2(%arg0: i32, %arg1: i32) -> (i32, i32) {
    %c0_i32 = arith.constant 0 : i32
    %c0_i32_0 = arith.constant 0 : i32
    return %c0_i32, %arg1 : i32, i32
  }
  func.func @transform_3(%arg0: i32, %arg1: i32) -> (i32, i32) {
    %c0_i32 = arith.constant 0 : i32
    return %arg0, %arg1 : i32, i32
  }
}

module attributes {stable_mosaic.version = 11 : i64} {
  func.func @_tau_kernel(%arg0: i32, %arg1: i32, %arg2: memref<2x20xf32, #tpu.memory_space<vmem>>, %arg3: memref<20x256xf32, #tpu.memory_space<vmem>>, %arg4: memref<1x256xf32, #tpu.memory_space<vmem>>, %arg5: memref<2x256xf32, #tpu.memory_space<vmem>>) attributes {dimension_semantics = [#tpu.dimension_semantics<parallel>, #tpu.dimension_semantics<parallel>], iteration_bounds = array<i64: 1, 1>, scalar_prefetch = 0 : i64, scratch_operands = 0 : i64, tpu.core_type = #tpu.core_type<tc>, window_params = [{transform_indices = @transform_0, window_bounds = array<i64: 2, 20>}, {transform_indices = @transform_1, window_bounds = array<i64: 20, 256>}, {transform_indices = @transform_2, window_bounds = array<i64: 1, 256>}, {transform_indices = @transform_3, window_bounds = array<i64: 2, 256>}]} {
    %c0 = arith.constant 0 : index
    %c0_0 = arith.constant 0 : index
    %0 = vector.load %arg2[%c0, %c0_0] : memref<2x20xf32, #tpu.memory_space<vmem>>, vector<2x20xf32>
    %c0_1 = arith.constant 0 : index
    %c0_2 = arith.constant 0 : index
    %1 = vector.load %arg3[%c0_1, %c0_2] : memref<20x256xf32, #tpu.memory_space<vmem>>, vector<20x256xf32>
    %cst = arith.constant dense<0.000000e+00> : vector<2x256xf32>
    %2 = tpu.matmul %0, %1, %cst {dimension_numbers = #tpu.dot_dimension_numbers<[1], [0], [0], [1], [0, 0, 1, 1], [], []>} : vector<2x20xf32>, vector<20x256xf32>, vector<2x256xf32> -> vector<2x256xf32>
    %c0_3 = arith.constant 0 : index
    %c0_4 = arith.constant 0 : index
    %3 = vector.load %arg4[%c0_3, %c0_4] : memref<1x256xf32, #tpu.memory_space<vmem>>, vector<1x256xf32>
    %4 = vector.broadcast %3 : vector<1x256xf32> to vector<2x256xf32>
    %5 = arith.addf %2, %4 : vector<2x256xf32>
    %c0_5 = arith.constant 0 : index
    %c0_6 = arith.constant 0 : index
    %6 = vector.load %arg5[%c0_5, %c0_6] : memref<2x256xf32, #tpu.memory_space<vmem>>, vector<2x256xf32>
    tpu.vector_store %arg5[%c0_5, %c0_6], %5 {strides = array<i32>} : memref<2x256xf32, #tpu.memory_space<vmem>>, vector<2x256xf32>,
    return
  }
  func.func @transform_0(%arg0: i32, %arg1: i32) -> (i32, i32) {
    %c0_i32 = arith.constant 0 : i32
    %c0_i32_0 = arith.constant 0 : i32
    return %arg0, %c0_i32 : i32, i32
  }
  func.func @transform_1(%arg0: i32, %arg1: i32) -> (i32, i32) {
    %c0_i32 = arith.constant 0 : i32
    %c0_i32_0 = arith.constant 0 : i32
    return %c0_i32, %arg1 : i32, i32
  }
  func.func @transform_2(%arg0: i32, %arg1: i32) -> (i32, i32) {
    %c0_i32 = arith.constant 0 : i32
    %c0_i32_0 = arith.constant 0 : i32
    return %c0_i32, %arg1 : i32, i32
  }
  func.func @transform_3(%arg0: i32, %arg1: i32) -> (i32, i32) {
    %c0_i32 = arith.constant 0 : i32
    return %arg0, %arg1 : i32, i32
  }
}

</mosaic_0001>

<llo_original>
// kernel: tpu_custom_call.1
$region0: #{tpu_custom_call.1}
  #allocation0 [shape = 'u32[]', space=smem, size = 0x4, offset = 0x4, fixed_abs, tag = 'smem constant byte address 0x4 - core index']
  #allocation1 [shape = 'u32[144,128]{1,0:T(1,128)}', space=vmem, size = 0x12000, scoped, tag = 'internal scratch']
  %s0 = inlined_call_operand.hbm [shape: f32[2,20], index: 0, kind: input, shape index: {}]
  %s1 = inlined_call_operand.hbm [shape: f32[20,256], index: 1, kind: input, shape index: {}]
  %s2 = inlined_call_operand.vmem [shape: f32[1,256], index: 2, kind: input, shape index: {}]
  %s3 = inlined_call_operand.hbm [shape: f32[2,256], index: 3, kind: output, shape index: {}]
  %s4 = sld [smem:[#allocation0]]
  $region30: #{tpu_custom_call.1} parent=0
    _
  %s6 = ssub.s32 1, %s4
  %s7 = scalar_select 0, %s6, %s4
  $region1: #{tpu_custom_call.1} parent=0
    #allocation2 [shape = 'u8[1024]{0}', space=vmem, size = 0x400, scoped, tag = 'input window, operand 0, single buffered']
    #allocation3 [shape = 's32[1]{0}', space=sflag, size = 0x4, scoped, tag = 'scoped memory for tpu_custom_call.1']
    #allocation4 [shape = 's32[1]{0}', space=sflag, size = 0x4, scoped, tag = 'scoped memory for tpu_custom_call.1']
    #allocation5 [shape = 'u8[24576]{0}', space=vmem, size = 0x6000, scoped, tag = 'input window, operand 1, single buffered']
    #allocation6 [shape = 's32[1]{0}', space=sflag, size = 0x4, scoped, tag = 'scoped memory for tpu_custom_call.1']
    #allocation7 [shape = 'u8[2048]{0}', space=vmem, size = 0x800, scoped, tag = 'output window, operand 0, single buffered']
    %8 = vsyncpa [#allocation3], 0
    %9 = vsyncpa [#allocation6], 0
    %10 = vsyncpa [#allocation4], 0
    // Predicated region
    $region2: #{tpu_custom_call.1} parent=1 // pred_check
      _
    $region3: #{tpu_custom_call.1} parent=1 // pred_check_branch
      %12 = sbr.rel (0) target = $region5
    $region4: #{tpu_custom_call.1} parent=1 // pred_region
      %s14 = ssub.s32 32, 32
      %15 = vsyncadd [#allocation3], %s14
      %s17 = sshll.u32 [#allocation2], 4
      %s18 = int_to_ptr.vmem [resolvable:$true] %s17
      %20 = dma.hbm_to_vmem [thread:$0]  %s0, 32, %s18, [#allocation3]
    $region5: #{tpu_custom_call.1} parent=1 // pred_fallthru
      _
    // Predicated region
    $region6: #{tpu_custom_call.1} parent=1 // pred_check
      _
    $region7: #{tpu_custom_call.1} parent=1 // pred_check_branch
      %22 = sbr.rel (0) target = $region9
    $region8: #{tpu_custom_call.1} parent=1 // pred_region
      %s24 = ssub.s32 768, 768
      %25 = vsyncadd [#allocation6], %s24
      %s26 = sshll.u32 [#allocation5], 4
      %s27 = int_to_ptr.vmem [resolvable:$true] %s26
      %32 = dma.hbm_to_vmem [thread:$0]  %s1, 768, %s27, [#allocation6], 256, 256, 16
    $region9: #{tpu_custom_call.1} parent=1 // pred_fallthru
      _
    // Predicated region
    $region10: #{tpu_custom_call.1} parent=1 // pred_check
      _
    $region11: #{tpu_custom_call.1} parent=1 // pred_check_branch
      %34 = sbr.rel (0) target = $region13
    $region12: #{tpu_custom_call.1} parent=1 // pred_region
      _
    $region13: #{tpu_custom_call.1} parent=1 // pred_fallthru
      _
    // Predicated region
    $region14: #{tpu_custom_call.1} parent=1 // pred_check
      _
    $region15: #{tpu_custom_call.1} parent=1 // pred_check_branch
      %36 = sbr.rel (0) target = $region17
    $region16: #{tpu_custom_call.1} parent=1 // pred_region
      %37 = dma.done [#allocation3], 32
    $region17: #{tpu_custom_call.1} parent=1 // pred_fallthru
      _
    // Predicated region
    $region18: #{tpu_custom_call.1} parent=1 // pred_check
      _
    $region19: #{tpu_custom_call.1} parent=1 // pred_check_branch
      %39 = sbr.rel (0) target = $region21
    $region20: #{tpu_custom_call.1} parent=1 // pred_region
      %40 = dma.done [#allocation6], 768
    $region21: #{tpu_custom_call.1} parent=1 // pred_fallthru
      _
    %v41 = vld [vmem:[#allocation2] sm:$0x3]
    %v42 = vld [vmem:[#allocation5] sm:$0xff]
    %v43 = vld [vmem:[#allocation5 + $0x8] sm:$0xff]
    %v44 = vld [vmem:[#allocation5 + $0x10] sm:$0xff]
    %v45 = vld [vmem:[#allocation5 + $0x18] sm:$0xff]
    %v46 = vld [vmem:[#allocation5 + $0x20] sm:$0xf]
    %v47 = vld [vmem:[#allocation5 + $0x28] sm:$0xf]
    %v48 = vld [vmem:[%s2] sm:$0x3]
    %v50 = vlaneseq
    %v51 = vshrl.u32 %v50, 7
    %v52 = vsub.s32 0, %v51
    %v53 = vrot.slane %v48, %v52
    %v54 = vlaneseq
    %v55 = vshrl.u32 %v54, 7
    %v56 = vsub.s32 1, %v55
    %v57 = vrot.slane %v48, %v56
    %vm60 = vcmask 162816
    %v62 = vsel %vm60, %v41, 0
    %vm64 = vcmask 1043456
    %v66 = vsel %vm64, %v46, 0
    %v69 = vsel %vm64, %v47, 0
    %71 = vmatprep.subr.mxu0 0.0
    %72 = vmatpush1.msra.mxu0 0.0
    %73 = vmatprep.subr.mxu0 0.0
    %74 = vmatpush1.msra.mxu0 0.0
    %75 = vmatprep.subr.mxu0 0.0
    %76 = vmatpush1.msra.mxu0 0.0
    %77 = vmatprep.subr.mxu0 0.0
    %78 = vmatpush1.msra.mxu0 0.0
    %79 = vmatprep.subr.mxu0 0.0
    %80 = vmatpush1.msra.mxu0 0.0
    %81 = vmatprep.subr.mxu0 0.0
    %82 = vmatpush1.msra.mxu0 0.0
    %83 = vmatprep.subr.mxu0 0.0
    %84 = vmatpush1.msra.mxu0 0.0
    %85 = vmatprep.subr.mxu0 0.0
    %86 = vmatpush1.msra.mxu0 0.0
    %87 = vmatprep.subr.mxu0 0.0
    %88 = vmatpush1.msra.mxu0 0.0
    %89 = vmatprep.subr.mxu0 0.0
    %90 = vmatpush1.msra.mxu0 0.0
    %91 = vmatprep.subr.mxu0 0.0
    %92 = vmatpush1.msra.mxu0 0.0
    %93 = vmatprep.subr.mxu0 0.0
    %94 = vmatpush1.msra.mxu0 0.0
    %95 = vmatprep.subr.mxu0 0.0
    %96 = vmatpush1.msra.mxu0 0.0
    %97 = vmatprep.subr.mxu0 %v69
    %98 = vmatpush1.msra.mxu0 %v66
    %99 = vmatprep.subr.mxu0 %v45
    %100 = vmatpush1.msra.mxu0 %v44
    %101 = vmatprep.subr.mxu0 %v43
    %102 = vmatpush1.msra.mxu0 %v42
    %103 = vmatprep.subr.mxu0 0.0
    %104 = vmatpush2.msra.mxu0 0.0
    %105 = vmatprep.subr.mxu0 0.0
    %106 = vmatpush2.msra.mxu0 0.0
    %107 = vmatprep.subr.mxu0 0.0
    %108 = vmatpush2.msra.mxu0 0.0
    %109 = vmatprep.subr.mxu0 0.0
    %110 = vmatpush2.msra.mxu0 0.0
    %111 = vmatprep.subr.mxu0 0.0
    %112 = vmatpush2.msra.mxu0 0.0
    %113 = vmatprep.subr.mxu0 0.0
    %114 = vmatpush2.msra.mxu0 0.0
    %115 = vmatprep.subr.mxu0 0.0
    %116 = vmatpush2.msra.mxu0 0.0
    %117 = vmatprep.subr.mxu0 0.0
    %118 = vmatpush2.msra.mxu0 0.0
    %119 = vmatprep.subr.mxu0 0.0
    %120 = vmatpush2.msra.mxu0 0.0
    %121 = vmatprep.subr.mxu0 0.0
    %122 = vmatpush2.msra.mxu0 0.0
    %123 = vmatprep.subr.mxu0 0.0
    %124 = vmatpush2.msra.mxu0 0.0
    %125 = vmatprep.subr.mxu0 0.0
    %126 = vmatpush2.msra.mxu0 0.0
    %127 = vmatprep.subr.mxu0 0.0
    %128 = vmatpush2.msra.mxu0 0.0
    %129 = vmatprep.subr.mxu0 0.0
    %130 = vmatpush2.msra.mxu0 0.0
    %131 = vmatprep.subr.mxu0 0.0
    %132 = vmatpush2.msra.mxu0 0.0
    %133 = vmatprep.subr.mxu0 0.0
    %134 = vmatpush2.msra.mxu0 0.0
    %135 = vmatprep.mubr.f32.mxu0 0.0
    %136 = vmatmul.mubr.f32.gmra.mxu0 %v62
    %v137 = vpop.f32.mrf.mxu0
    %v138 = vadd.f32 %v53, %v137
    %v139 = vpop.f32.mrf.mxu0
    %v140 = vadd.f32 %v57, %v139
    %141 = vdwg.mxu0
    %v144 = vcombine.low %v138, %v140
    %v146 = vunpack.c.l.s4 1983009808
    %v147 = vunpack.c.0.s8 %v146
    %v148 = vlaneseq
    %v149 = vshrl.u32 %v148, 7
    %v150 = vsub.s32 %v147, %v149
    %v151 = vrot.slane %v144, %v150
    %153 = vst [vmem:[#allocation7] sm:$0xf] %v151
    // Predicated region
    $region22: #{tpu_custom_call.1} parent=1 // pred_check
      _
    $region23: #{tpu_custom_call.1} parent=1 // pred_check_branch
      %155 = sbr.rel (0) target = $region25
    $region24: #{tpu_custom_call.1} parent=1 // pred_region
      %s157 = ssub.s32 64, 64
      %158 = vsyncadd [#allocation4], %s157
      %s160 = sshll.u32 [#allocation7], 4
      %s161 = int_to_ptr.vmem [resolvable:$true] %s160
      %163 = dma.vmem_to_hbm [thread:$0]  %s161, 64, %s3, [#allocation4]
    $region25: #{tpu_custom_call.1} parent=1 // pred_fallthru
      _
    // Predicated region
    $region26: #{tpu_custom_call.1} parent=1 // pred_check
      _
    $region27: #{tpu_custom_call.1} parent=1 // pred_check_branch
      %165 = sbr.rel (0) target = $region29
    $region28: #{tpu_custom_call.1} parent=1 // pred_region
      %166 = dma.done [#allocation4], 64
    $region29: #{tpu_custom_call.1} parent=1 // pred_fallthru
      _
    %167 = vsyncpa [#allocation3], 1
    %168 = vsyncpa [#allocation6], 1
    %169 = vsyncpa [#allocation4], 1

// kernel: tpu_custom_call.1
$region0: #{tpu_custom_call.1}
  #allocation0 [shape = 'u32[]', space=smem, size = 0x4, offset = 0x4, fixed_abs, tag = 'smem constant byte address 0x4 - core index']
  #allocation1 [shape = 'u32[144,128]{1,0:T(1,128)}', space=vmem, size = 0x12000, scoped, tag = 'internal scratch']
  %s0 = inlined_call_operand.hbm [shape: f32[2,20], index: 0, kind: input, shape index: {}]
  %s1 = inlined_call_operand.hbm [shape: f32[20,256], index: 1, kind: input, shape index: {}]
  %s2 = inlined_call_operand.vmem [shape: f32[1,256], index: 2, kind: input, shape index: {}]
  %s3 = inlined_call_operand.hbm [shape: f32[2,256], index: 3, kind: output, shape index: {}]
  %s4 = sld [smem:[#allocation0]]
  $region30: #{tpu_custom_call.1} parent=0
    _
  %s6 = ssub.s32 1, %s4
  %s7 = scalar_select 0, %s6, %s4
  $region1: #{tpu_custom_call.1} parent=0
    #allocation2 [shape = 'u8[1024]{0}', space=vmem, size = 0x400, scoped, tag = 'input window, operand 0, single buffered']
    #allocation3 [shape = 's32[1]{0}', space=sflag, size = 0x4, scoped, tag = 'scoped memory for tpu_custom_call.1']
    #allocation4 [shape = 's32[1]{0}', space=sflag, size = 0x4, scoped, tag = 'scoped memory for tpu_custom_call.1']
    #allocation5 [shape = 'u8[24576]{0}', space=vmem, size = 0x6000, scoped, tag = 'input window, operand 1, single buffered']
    #allocation6 [shape = 's32[1]{0}', space=sflag, size = 0x4, scoped, tag = 'scoped memory for tpu_custom_call.1']
    #allocation7 [shape = 'u8[2048]{0}', space=vmem, size = 0x800, scoped, tag = 'output window, operand 0, single buffered']
    %8 = vsyncpa [#allocation3], 0
    %9 = vsyncpa [#allocation6], 0
    %10 = vsyncpa [#allocation4], 0
    // Predicated region
    $region2: #{tpu_custom_call.1} parent=1 // pred_check
      _
    $region3: #{tpu_custom_call.1} parent=1 // pred_check_branch
      %12 = sbr.rel (0) target = $region5
    $region4: #{tpu_custom_call.1} parent=1 // pred_region
      %s14 = ssub.s32 32, 32
      %15 = vsyncadd [#allocation3], %s14
      %s17 = sshll.u32 [#allocation2], 4
      %s18 = int_to_ptr.vmem [resolvable:$true] %s17
      %20 = dma.hbm_to_vmem [thread:$0]  %s0, 32, %s18, [#allocation3]
    $region5: #{tpu_custom_call.1} parent=1 // pred_fallthru
      _
    // Predicated region
    $region6: #{tpu_custom_call.1} parent=1 // pred_check
      _
    $region7: #{tpu_custom_call.1} parent=1 // pred_check_branch
      %22 = sbr.rel (0) target = $region9
    $region8: #{tpu_custom_call.1} parent=1 // pred_region
      %s24 = ssub.s32 768, 768
      %25 = vsyncadd [#allocation6], %s24
      %s26 = sshll.u32 [#allocation5], 4
      %s27 = int_to_ptr.vmem [resolvable:$true] %s26
      %32 = dma.hbm_to_vmem [thread:$0]  %s1, 768, %s27, [#allocation6], 256, 256, 16
    $region9: #{tpu_custom_call.1} parent=1 // pred_fallthru
      _
    // Predicated region
    $region10: #{tpu_custom_call.1} parent=1 // pred_check
      _
    $region11: #{tpu_custom_call.1} parent=1 // pred_check_branch
      %34 = sbr.rel (0) target = $region13
    $region12: #{tpu_custom_call.1} parent=1 // pred_region
      _
    $region13: #{tpu_custom_call.1} parent=1 // pred_fallthru
      _
    // Predicated region
    $region14: #{tpu_custom_call.1} parent=1 // pred_check
      _
    $region15: #{tpu_custom_call.1} parent=1 // pred_check_branch
      %36 = sbr.rel (0) target = $region17
    $region16: #{tpu_custom_call.1} parent=1 // pred_region
      %37 = dma.done [#allocation3], 32
    $region17: #{tpu_custom_call.1} parent=1 // pred_fallthru
      _
    // Predicated region
    $region18: #{tpu_custom_call.1} parent=1 // pred_check
      _
    $region19: #{tpu_custom_call.1} parent=1 // pred_check_branch
      %39 = sbr.rel (0) target = $region21
    $region20: #{tpu_custom_call.1} parent=1 // pred_region
      %40 = dma.done [#allocation6], 768
    $region21: #{tpu_custom_call.1} parent=1 // pred_fallthru
      _
    %v41 = vld [vmem:[#allocation2] sm:$0x3]
    %v42 = vld [vmem:[#allocation5] sm:$0xff]
    %v43 = vld [vmem:[#allocation5 + $0x8] sm:$0xff]
    %v44 = vld [vmem:[#allocation5 + $0x10] sm:$0xff]
    %v45 = vld [vmem:[#allocation5 + $0x18] sm:$0xff]
    %v46 = vld [vmem:[#allocation5 + $0x20] sm:$0xf]
    %v47 = vld [vmem:[#allocation5 + $0x28] sm:$0xf]
    %v48 = vld [vmem:[%s2] sm:$0x3]
    %v50 = vlaneseq
    %v51 = vshrl.u32 %v50, 7
    %v52 = vsub.s32 0, %v51
    %v53 = vrot.slane %v48, %v52
    %v54 = vlaneseq
    %v55 = vshrl.u32 %v54, 7
    %v56 = vsub.s32 1, %v55
    %v57 = vrot.slane %v48, %v56
    %vm60 = vcmask 162816
    %v62 = vsel %vm60, %v41, 0
    %vm64 = vcmask 1043456
    %v66 = vsel %vm64, %v46, 0
    %v69 = vsel %vm64, %v47, 0
    %71 = vmatprep.subr.mxu0 0.0
    %72 = vmatpush1.msra.mxu0 0.0
    %73 = vmatprep.subr.mxu0 0.0
    %74 = vmatpush1.msra.mxu0 0.0
    %75 = vmatprep.subr.mxu0 0.0
    %76 = vmatpush1.msra.mxu0 0.0
    %77 = vmatprep.subr.mxu0 0.0
    %78 = vmatpush1.msra.mxu0 0.0
    %79 = vmatprep.subr.mxu0 0.0
    %80 = vmatpush1.msra.mxu0 0.0
    %81 = vmatprep.subr.mxu0 0.0
    %82 = vmatpush1.msra.mxu0 0.0
    %83 = vmatprep.subr.mxu0 0.0
    %84 = vmatpush1.msra.mxu0 0.0
    %85 = vmatprep.subr.mxu0 0.0
    %86 = vmatpush1.msra.mxu0 0.0
    %87 = vmatprep.subr.mxu0 0.0
    %88 = vmatpush1.msra.mxu0 0.0
    %89 = vmatprep.subr.mxu0 0.0
    %90 = vmatpush1.msra.mxu0 0.0
    %91 = vmatprep.subr.mxu0 0.0
    %92 = vmatpush1.msra.mxu0 0.0
    %93 = vmatprep.subr.mxu0 0.0
    %94 = vmatpush1.msra.mxu0 0.0
    %95 = vmatprep.subr.mxu0 0.0
    %96 = vmatpush1.msra.mxu0 0.0
    %97 = vmatprep.subr.mxu0 %v69
    %98 = vmatpush1.msra.mxu0 %v66
    %99 = vmatprep.subr.mxu0 %v45
    %100 = vmatpush1.msra.mxu0 %v44
    %101 = vmatprep.subr.mxu0 %v43
    %102 = vmatpush1.msra.mxu0 %v42
    %103 = vmatprep.subr.mxu0 0.0
    %104 = vmatpush2.msra.mxu0 0.0
    %105 = vmatprep.subr.mxu0 0.0
    %106 = vmatpush2.msra.mxu0 0.0
    %107 = vmatprep.subr.mxu0 0.0
    %108 = vmatpush2.msra.mxu0 0.0
    %109 = vmatprep.subr.mxu0 0.0
    %110 = vmatpush2.msra.mxu0 0.0
    %111 = vmatprep.subr.mxu0 0.0
    %112 = vmatpush2.msra.mxu0 0.0
    %113 = vmatprep.subr.mxu0 0.0
    %114 = vmatpush2.msra.mxu0 0.0
    %115 = vmatprep.subr.mxu0 0.0
    %116 = vmatpush2.msra.mxu0 0.0
    %117 = vmatprep.subr.mxu0 0.0
    %118 = vmatpush2.msra.mxu0 0.0
    %119 = vmatprep.subr.mxu0 0.0
    %120 = vmatpush2.msra.mxu0 0.0
    %121 = vmatprep.subr.mxu0 0.0
    %122 = vmatpush2.msra.mxu0 0.0
    %123 = vmatprep.subr.mxu0 0.0
    %124 = vmatpush2.msra.mxu0 0.0
    %125 = vmatprep.subr.mxu0 0.0
    %126 = vmatpush2.msra.mxu0 0.0
    %127 = vmatprep.subr.mxu0 0.0
    %128 = vmatpush2.msra.mxu0 0.0
    %129 = vmatprep.subr.mxu0 0.0
    %130 = vmatpush2.msra.mxu0 0.0
    %131 = vmatprep.subr.mxu0 0.0
    %132 = vmatpush2.msra.mxu0 0.0
    %133 = vmatprep.subr.mxu0 0.0
    %134 = vmatpush2.msra.mxu0 0.0
    %135 = vmatprep.mubr.f32.mxu0 0.0
    %136 = vmatmul.mubr.f32.gmra.mxu0 %v62
    %v137 = vpop.f32.mrf.mxu0
    %v138 = vadd.f32 %v53, %v137
    %v139 = vpop.f32.mrf.mxu0
    %v140 = vadd.f32 %v57, %v139
    %141 = vdwg.mxu0
    %v144 = vcombine.low %v138, %v140
    %v146 = vunpack.c.l.s4 1983009808
    %v147 = vunpack.c.0.s8 %v146
    %v148 = vlaneseq
    %v149 = vshrl.u32 %v148, 7
    %v150 = vsub.s32 %v147, %v149
    %v151 = vrot.slane %v144, %v150
    %153 = vst [vmem:[#allocation7] sm:$0xf] %v151
    // Predicated region
    $region22: #{tpu_custom_call.1} parent=1 // pred_check
      _
    $region23: #{tpu_custom_call.1} parent=1 // pred_check_branch
      %155 = sbr.rel (0) target = $region25
    $region24: #{tpu_custom_call.1} parent=1 // pred_region
      %s157 = ssub.s32 64, 64
      %158 = vsyncadd [#allocation4], %s157
      %s160 = sshll.u32 [#allocation7], 4
      %s161 = int_to_ptr.vmem [resolvable:$true] %s160
      %163 = dma.vmem_to_hbm [thread:$0]  %s161, 64, %s3, [#allocation4]
    $region25: #{tpu_custom_call.1} parent=1 // pred_fallthru
      _
    // Predicated region
    $region26: #{tpu_custom_call.1} parent=1 // pred_check
      _
    $region27: #{tpu_custom_call.1} parent=1 // pred_check_branch
      %165 = sbr.rel (0) target = $region29
    $region28: #{tpu_custom_call.1} parent=1 // pred_region
      %166 = dma.done [#allocation4], 64
    $region29: #{tpu_custom_call.1} parent=1 // pred_fallthru
      _
    %167 = vsyncpa [#allocation3], 1
    %168 = vsyncpa [#allocation6], 1
    %169 = vsyncpa [#allocation4], 1

</llo_original>
